<compile_context>
chip_gen: v6e
topology: v6e:2x2x1
jax: 0.10.0
libtpu: 0.0.40
codegen_flags: <defaults>
</compile_context>

<pallas_src>
import functools

import jax
import jax.numpy as jnp
from jax import lax
from jax.experimental import pallas as pl
from jax.experimental.pallas import tpu as pltpu

LANES = 128
SUBLANES = 8
MAX_TILE_ROWS = 2048   # (2048, 128) f32 tile = 1 MiB; ~at the streaming knee


def _round_up(x, m):
    return (x + m - 1) // m * m


def _accumulate(edge_ref, lab_ref, acc_cp, acc_cn, acc_bp, acc_bn, tail_rows):
    """Accumulate one (tile_r, LANES) tile. tail_rows=None -> all rows valid."""
    x = edge_ref[...].astype(jnp.float32)
    lab = lab_ref[...]
    pos = lab == 1
    neg = lab == 0

    if tail_rows is not None:
        # Only the single ragged last tile pays for this row mask.
        row = lax.broadcasted_iota(jnp.int32, edge_ref.shape, 0)
        valid = row < tail_rows
        pos = jnp.logical_and(pos, valid)
        neg = jnp.logical_and(neg, valid)

    # Numerically stable BCE-with-logits against clamped target y = (lab==1).
    # Ignored labels (>1), lane-padding (label==2) and partial-block garbage
    # rows contribute nothing because they are excluded via selects.
    y = pos.astype(jnp.float32)
    bce = jnp.maximum(x, 0.0) - x * y + jnp.log1p(jnp.exp(-jnp.abs(x)))

    acc_cp[...] += pos.astype(jnp.int32)
    acc_cn[...] += neg.astype(jnp.int32)
    acc_bp[...] += jnp.where(pos, bce, 0.0)
    acc_bn[...] += jnp.where(neg, bce, 0.0)


def _fused_kernel(edge_ref, lab_ref,
                  cnt_pos_out, cnt_neg_out, bce_pos_out, bce_neg_out,
                  acc_cp, acc_cn, acc_bp, acc_bn,
                  *, n_tiles, tiles_per_split, tail_rows, grid_padded):
    t = pl.program_id(1)

    @pl.when(t == 0)
    def _init():
        acc_cp[...] = jnp.zeros_like(acc_cp)
        acc_cn[...] = jnp.zeros_like(acc_cn)
        acc_bp[...] = jnp.zeros_like(acc_bp)
        acc_bn[...] = jnp.zeros_like(acc_bn)

    # Global (un-clamped) tile id for this grid step.
    g = pl.program_id(0) * tiles_per_split + t
    args = (edge_ref, lab_ref, acc_cp, acc_cn, acc_bp, acc_bn)

    if tail_rows is not None:
        # Ragged last real tile: unmasked fast path for every other real tile,
        # row-masked path only for tile n_tiles-1, skip padded duplicates.
        @pl.when(g < n_tiles - 1)
        def _full():
            _accumulate(*args, tail_rows=None)

        @pl.when(g == n_tiles - 1)
        def _tail():
            _accumulate(*args, tail_rows=tail_rows)
    elif grid_padded:
        # Exact tiles, but the grid is padded: skip duplicated (clamped) tiles.
        @pl.when(g < n_tiles)
        def _full():
            _accumulate(*args, tail_rows=None)
    else:
        # Clean case: no masks, no guards.
        _accumulate(*args, tail_rows=None)

    @pl.when(t == pl.num_programs(1) - 1)
    def _finalize():
        tile_r, lanes = acc_bp.shape
        k = tile_r // SUBLANES
        # Fold (tile_r, 128) accumulators to lane-dense (8, 128) partials once.
        cnt_pos_out[0] = acc_cp[...].reshape(k, SUBLANES, lanes).sum(axis=0)
        cnt_neg_out[0] = acc_cn[...].reshape(k, SUBLANES, lanes).sum(axis=0)
        bce_pos_out[0] = acc_bp[...].reshape(k, SUBLANES, lanes).sum(axis=0)
        bce_neg_out[0] = acc_bn[...].reshape(k, SUBLANES, lanes).sum(axis=0)


def binary_edge_loss(edge, edge_label, loss_weight=1.0, alpha=1.0, beta=1.0,
                     max_tile_rows=MAX_TILE_ROWS):
    """loss_weight * mean(weight * BCEWithLogits(edge, edge_label)).

    Labels: 1 = positive, 0 = negative, >1 (e.g. 255) = ignored (weight 0).
    Labels may be any integer/bool/float dtype (keep int8/uint8 to minimize
    HBM traffic); edge may be f32 or bf16 (upcast happens inside the kernel).
    """
    total = edge.size
    flat_e = edge.reshape(-1)
    flat_l = edge_label.reshape(-1)

    # Only lane alignment requires a pad copy (and only for misaligned sizes).
    # Labels are padded with an ignore value (2) so no element mask is needed.
    padded = _round_up(total, LANES)
    if padded != total:
        if flat_l.dtype == jnp.bool_:
            flat_l = flat_l.astype(jnp.uint8)   # bool can't hold the ignore pad
        flat_e = jnp.pad(flat_e, (0, padded - total))
        flat_l = jnp.pad(flat_l, (0, padded - total), constant_values=2)

    rows = padded // LANES
    tile_r = max(SUBLANES, (max_tile_rows // SUBLANES) * SUBLANES)
    tile_r = min(tile_r, _round_up(rows, SUBLANES))
    n_tiles = pl.cdiv(rows, tile_r)
    n_splits = 2 if n_tiles >= 2 else 1          # megacore split (v7x)
    tps = pl.cdiv(n_tiles, n_splits)             # tiles per split
    grid_padded = (n_splits * tps) != n_tiles
    rem = rows % tile_r
    tail_rows = rem if rem != 0 else None        # ragged last real tile

    e2 = flat_e.reshape(rows, LANES)
    l2 = flat_l.reshape(rows, LANES)

    if grid_padded:
        # Clamp duplicated tiles to the last real tile; the kernel skips their
        # contribution with a scalar pl.when guard, so nothing double counts.
        def in_map(s, t):
            return (jnp.minimum(s * tps + t, n_tiles - 1), 0)
    else:
        def in_map(s, t):
            return (s * tps + t, 0)

    part_shape = (n_splits, SUBLANES, LANES)
    out_spec = pl.BlockSpec((1, SUBLANES, LANES), lambda s, t: (s, 0, 0))

    kernel = functools.partial(_fused_kernel, n_tiles=n_tiles,
                               tiles_per_split=tps, tail_rows=tail_rows,
                               grid_padded=grid_padded)

    cnt_pos, cnt_neg, bce_pos, bce_neg = pl.pallas_call(
        kernel,
        out_shape=(jax.ShapeDtypeStruct(part_shape, jnp.int32),
                   jax.ShapeDtypeStruct(part_shape, jnp.int32),
                   jax.ShapeDtypeStruct(part_shape, jnp.float32),
                   jax.ShapeDtypeStruct(part_shape, jnp.float32)),
        grid=(n_splits, tps),
        in_specs=[pl.BlockSpec((tile_r, LANES), in_map),
                  pl.BlockSpec((tile_r, LANES), in_map)],
        out_specs=(out_spec, out_spec, out_spec, out_spec),
        scratch_shapes=[pltpu.VMEM((tile_r, LANES), jnp.int32),
                        pltpu.VMEM((tile_r, LANES), jnp.int32),
                        pltpu.VMEM((tile_r, LANES), jnp.float32),
                        pltpu.VMEM((tile_r, LANES), jnp.float32)],
        compiler_params=pltpu.CompilerParams(
            dimension_semantics=("parallel", "arbitrary"),
            vmem_limit_bytes=32 * 1024 * 1024),
    )(e2, l2)

    # Tiny wrapper-side combine: counts are exact int32; weights applied once.
    pos_num = jnp.sum(cnt_pos).astype(jnp.float32)
    neg_num = jnp.sum(cnt_neg).astype(jnp.float32)
    sum_num = pos_num + neg_num
    w_pos = jnp.float32(alpha) * neg_num / sum_num
    w_neg = jnp.float32(beta) * pos_num / sum_num
    loss_sum = w_pos * jnp.sum(bce_pos) + w_neg * jnp.sum(bce_neg)
    # reduction='mean' divides by numel(edge) (ignored pixels included), which
    # matches F.binary_cross_entropy_with_logits(weight=..., reduction='mean').
    return jnp.float32(loss_weight) * loss_sum / jnp.float32(total)


def _reference(edge, edge_label, loss_weight=1.0, alpha=1.0, beta=1.0):
    """Pure-JAX reference mirroring the PyTorch weighted_binary_loss."""
    x = edge.astype(jnp.float32)
    lab = edge_label
    pos = lab == 1
    neg = lab == 0
    pos_num = jnp.sum(pos).astype(jnp.float32)
    neg_num = jnp.sum(neg).astype(jnp.float32)
    sum_num = pos_num + neg_num
    w = jnp.where(pos, alpha * neg_num / sum_num,
                  jnp.where(neg, beta * pos_num / sum_num, 0.0))
    y = lab.astype(jnp.float32)
    bce = jnp.maximum(x, 0.0) - x * y + jnp.log1p(jnp.exp(-jnp.abs(x)))
    return loss_weight * jnp.mean(w * bce)


if __name__ == "__main__":
    key = jax.random.PRNGKey(0)

    def make_inputs(k, shape, dtype=jnp.float32):
        k_e, k_l = jax.random.split(k)
        edge = jax.random.normal(k_e, shape, dtype=jnp.float32).astype(dtype)
        u = jax.random.uniform(k_l, shape)
        # labels in {0, 1, 255 (ignore)}
        edge_label = jnp.where(u < 0.45, 0, jnp.where(u < 0.9, 1, 255))
        return edge, edge_label

    k1, k2, k3, k4 = jax.random.split(key, 4)

    # Case 1: small, lane-aligned size -> no pad, no mask, single tile.
    e1, l1 = make_inputs(k1, (2, 1, 32, 32))
    out1 = jax.block_until_ready(
        binary_edge_loss(e1, l1, loss_weight=2.0, alpha=1.5, beta=0.5))
    ref1 = _reference(e1, l1, loss_weight=2.0, alpha=1.5, beta=0.5)
    assert jnp.allclose(out1, ref1, rtol=1e-5, atol=1e-6), (out1, ref1)

    # Case 2: misaligned size -> lane pad with ignore label + ragged last tile
    # (row-masked branch) + exact 2-way megacore split.
    e2, l2 = make_inputs(k2, (2, 1, 72, 100))
    out2 = jax.block_until_ready(binary_edge_loss(e2, l2, max_tile_rows=64))
    ref2 = _reference(e2, l2)
    assert jnp.allclose(out2, ref2, rtol=1e-5, atol=1e-6), (out2, ref2)

    # Case 3: odd tile count -> clamped index map + duplicate-tile skip guard
    # + ragged last tile + lane pad, all at once.
    e3, l3 = make_inputs(k3, (1, 1, 120, 100))
    out3 = jax.block_until_ready(binary_edge_loss(e3, l3, max_tile_rows=40))
    ref3 = _reference(e3, l3)
    assert jnp.allclose(out3, ref3, rtol=1e-5, atol=1e-6), (out3, ref3)

    # Case 4: bf16 logits, clean multi-tile fast path (no masks, no guards),
    # even 2-way split.
    e4, l4 = make_inputs(k4, (2, 1, 64, 128), dtype=jnp.bfloat16)
    out4 = jax.block_until_ready(binary_edge_loss(e4, l4, max_tile_rows=32))
    ref4 = _reference(e4, l4)
    assert jnp.allclose(out4, ref4, rtol=1e-5, atol=1e-6), (out4, ref4)

    print("KERNEL_OK")
</pallas_src>

<mosaic_0001>
module attributes {stable_mosaic.version = 11 : i64} {
  func.func @_fused_kernel(%arg0: i32, %arg1: i32, %arg2: memref<16x128xf32, #tpu.memory_space<vmem>>, %arg3: memref<16x128xi32, #tpu.memory_space<vmem>>, %arg4: memref<1x8x128xi32, #tpu.memory_space<vmem>>, %arg5: memref<1x8x128xi32, #tpu.memory_space<vmem>>, %arg6: memref<1x8x128xf32, #tpu.memory_space<vmem>>, %arg7: memref<1x8x128xf32, #tpu.memory_space<vmem>>, %arg8: memref<16x128xi32, #tpu.memory_space<vmem>>, %arg9: memref<16x128xi32, #tpu.memory_space<vmem>>, %arg10: memref<16x128xf32, #tpu.memory_space<vmem>>, %arg11: memref<16x128xf32, #tpu.memory_space<vmem>>) attributes {dimension_semantics = [#tpu.dimension_semantics<parallel>, #tpu.dimension_semantics<arbitrary>], iteration_bounds = array<i64: 1, 1>, scalar_prefetch = 0 : i64, scratch_operands = 4 : i64, tpu.core_type = #tpu.core_type<tc>, window_params = [{transform_indices = @transform_0, window_bounds = array<i64: 16, 128>}, {transform_indices = @transform_1, window_bounds = array<i64: 16, 128>}, {transform_indices = @transform_2, window_bounds = array<i64: 1, 8, 128>}, {transform_indices = @transform_3, window_bounds = array<i64: 1, 8, 128>}, {transform_indices = @transform_4, window_bounds = array<i64: 1, 8, 128>}, {transform_indices = @transform_5, window_bounds = array<i64: 1, 8, 128>}]} {
    %c0_i32 = arith.constant 0 : i32
    %0 = arith.cmpi eq, %arg1, %c0_i32 : i32
    %1 = arith.extui %0 : i1 to i32
    %c0_i32_0 = arith.constant 0 : i32
    %2 = arith.cmpi ne, %1, %c0_i32_0 : i32
    scf.if %2 {
      %c0_i32_26 = arith.constant 0 : i32
      %42 = vector.broadcast %c0_i32_26 : i32 to vector<16x128xi32>
      %c0_27 = arith.constant 0 : index
      %c0_28 = arith.constant 0 : index
      %43 = vector.load %arg8[%c0_27, %c0_28] : memref<16x128xi32, #tpu.memory_space<vmem>>, vector<16x128xi32>
      tpu.vector_store %arg8[%c0_27, %c0_28], %42 {strides = array<i32>} : memref<16x128xi32, #tpu.memory_space<vmem>>, vector<16x128xi32>,
      %c0_i32_29 = arith.constant 0 : i32
      %44 = vector.broadcast %c0_i32_29 : i32 to vector<16x128xi32>
      %c0_30 = arith.constant 0 : index
      %c0_31 = arith.constant 0 : index
      %45 = vector.load %arg9[%c0_30, %c0_31] : memref<16x128xi32, #tpu.memory_space<vmem>>, vector<16x128xi32>
      tpu.vector_store %arg9[%c0_30, %c0_31], %44 {strides = array<i32>} : memref<16x128xi32, #tpu.memory_space<vmem>>, vector<16x128xi32>,
      %cst_32 = arith.constant 0.000000e+00 : f32
      %46 = vector.broadcast %cst_32 : f32 to vector<16x128xf32>
      %c0_33 = arith.constant 0 : index
      %c0_34 = arith.constant 0 : index
      %47 = vector.load %arg10[%c0_33, %c0_34] : memref<16x128xf32, #tpu.memory_space<vmem>>, vector<16x128xf32>
      tpu.vector_store %arg10[%c0_33, %c0_34], %46 {strides = array<i32>} : memref<16x128xf32, #tpu.memory_space<vmem>>, vector<16x128xf32>,
      %cst_35 = arith.constant 0.000000e+00 : f32
      %48 = vector.broadcast %cst_35 : f32 to vector<16x128xf32>
      %c0_36 = arith.constant 0 : index
      %c0_37 = arith.constant 0 : index
      %49 = vector.load %arg11[%c0_36, %c0_37] : memref<16x128xf32, #tpu.memory_space<vmem>>, vector<16x128xf32>
      tpu.vector_store %arg11[%c0_36, %c0_37], %48 {strides = array<i32>} : memref<16x128xf32, #tpu.memory_space<vmem>>, vector<16x128xf32>,
    } else {
    }
    %c0 = arith.constant 0 : index
    %c0_1 = arith.constant 0 : index
    %3 = vector.load %arg2[%c0, %c0_1] : memref<16x128xf32, #tpu.memory_space<vmem>>, vector<16x128xf32>
    %c0_2 = arith.constant 0 : index
    %c0_3 = arith.constant 0 : index
    %4 = vector.load %arg3[%c0_2, %c0_3] : memref<16x128xi32, #tpu.memory_space<vmem>>, vector<16x128xi32>
    %c1_i32 = arith.constant 1 : i32
    %5 = vector.broadcast %c1_i32 : i32 to vector<16x128xi32>
    %6 = arith.cmpi eq, %4, %5 : vector<16x128xi32>
    %c0_i32_4 = arith.constant 0 : i32
    %7 = vector.broadcast %c0_i32_4 : i32 to vector<16x128xi32>
    %8 = arith.cmpi eq, %4, %7 : vector<16x128xi32>
    %9 = arith.extui %6 : vector<16x128xi1> to vector<16x128xi32>
    %10 = arith.sitofp %9 : vector<16x128xi32> to vector<16x128xf32>
    %cst = arith.constant 0.000000e+00 : f32
    %11 = vector.broadcast %cst : f32 to vector<16x128xf32>
    %12 = arith.maximumf %3, %11 : vector<16x128xf32>
    %13 = arith.mulf %3, %10 : vector<16x128xf32>
    %14 = arith.subf %12, %13 : vector<16x128xf32>
    %15 = math.absf %3 : vector<16x128xf32>
    %cst_5 = arith.constant 0.000000e+00 : f32
    %16 = vector.broadcast %cst_5 : f32 to vector<16x128xf32>
    %17 = arith.subf %16, %15 : vector<16x128xf32>
    %18 = math.exp %17 : vector<16x128xf32>
    %19 = math.log1p %18 : vector<16x128xf32>
    %20 = arith.addf %14, %19 : vector<16x128xf32>
    %c0_6 = arith.constant 0 : index
    %c0_7 = arith.constant 0 : index
    %21 = vector.load %arg8[%c0_6, %c0_7] : memref<16x128xi32, #tpu.memory_space<vmem>>, vector<16x128xi32>
    %22 = arith.extui %6 : vector<16x128xi1> to vector<16x128xi32>
    %23 = arith.addi %21, %22 : vector<16x128xi32>
    %c0_8 = arith.constant 0 : index
    %c0_9 = arith.constant 0 : index
    %24 = vector.load %arg8[%c0_8, %c0_9] : memref<16x128xi32, #tpu.memory_space<vmem>>, vector<16x128xi32>
    tpu.vector_store %arg8[%c0_8, %c0_9], %23 {strides = array<i32>} : memref<16x128xi32, #tpu.memory_space<vmem>>, vector<16x128xi32>,
    %c0_10 = arith.constant 0 : index
    %c0_11 = arith.constant 0 : index
    %25 = vector.load %arg9[%c0_10, %c0_11] : memref<16x128xi32, #tpu.memory_space<vmem>>, vector<16x128xi32>
    %26 = arith.extui %8 : vector<16x128xi1> to vector<16x128xi32>
    %27 = arith.addi %25, %26 : vector<16x128xi32>
    %c0_12 = arith.constant 0 : index
    %c0_13 = arith.constant 0 : index
    %28 = vector.load %arg9[%c0_12, %c0_13] : memref<16x128xi32, #tpu.memory_space<vmem>>, vector<16x128xi32>
    tpu.vector_store %arg9[%c0_12, %c0_13], %27 {strides = array<i32>} : memref<16x128xi32, #tpu.memory_space<vmem>>, vector<16x128xi32>,
    %c0_14 = arith.constant 0 : index
    %c0_15 = arith.constant 0 : index
    %29 = vector.load %arg10[%c0_14, %c0_15] : memref<16x128xf32, #tpu.memory_space<vmem>>, vector<16x128xf32>
    %cst_16 = arith.constant 0.000000e+00 : f32
    %30 = vector.broadcast %cst_16 : f32 to vector<16x128xf32>
    %31 = arith.select %6, %20, %30 : vector<16x128xi1>, vector<16x128xf32>
    %32 = arith.addf %29, %31 : vector<16x128xf32>
    %c0_17 = arith.constant 0 : index
    %c0_18 = arith.constant 0 : index
    %33 = vector.load %arg10[%c0_17, %c0_18] : memref<16x128xf32, #tpu.memory_space<vmem>>, vector<16x128xf32>
    tpu.vector_store %arg10[%c0_17, %c0_18], %32 {strides = array<i32>} : memref<16x128xf32, #tpu.memory_space<vmem>>, vector<16x128xf32>,
    %c0_19 = arith.constant 0 : index
    %c0_20 = arith.constant 0 : index
    %34 = vector.load %arg11[%c0_19, %c0_20] : memref<16x128xf32, #tpu.memory_space<vmem>>, vector<16x128xf32>
    %cst_21 = arith.constant 0.000000e+00 : f32
    %35 = vector.broadcast %cst_21 : f32 to vector<16x128xf32>
    %36 = arith.select %8, %20, %35 : vector<16x128xi1>, vector<16x128xf32>
    %37 = arith.addf %34, %36 : vector<16x128xf32>
    %c0_22 = arith.constant 0 : index
    %c0_23 = arith.constant 0 : index
    %38 = vector.load %arg11[%c0_22, %c0_23] : memref<16x128xf32, #tpu.memory_space<vmem>>, vector<16x128xf32>
    tpu.vector_store %arg11[%c0_22, %c0_23], %37 {strides = array<i32>} : memref<16x128xf32, #tpu.memory_space<vmem>>, vector<16x128xf32>,
    %c0_i32_24 = arith.constant 0 : i32
    %39 = arith.cmpi eq, %arg1, %c0_i32_24 : i32
    %40 = arith.extui %39 : i1 to i32
    %c0_i32_25 = arith.constant 0 : i32
    %41 = arith.cmpi ne, %40, %c0_i32_25 : i32
    scf.if %41 {
      %c0_26 = arith.constant 0 : index
      %c0_27 = arith.constant 0 : index
      %42 = vector.load %arg8[%c0_26, %c0_27] : memref<16x128xi32, #tpu.memory_space<vmem>>, vector<16x128xi32>
      %43 = vector.shape_cast %42 : vector<16x128xi32> to vector<2x8x128xi32>
      %cst_28 = arith.constant dense<0> : vector<8x128xi32>
      %44 = vector.multi_reduction <add>, %43, %cst_28 [0] : vector<2x8x128xi32> to vector<8x128xi32>
      %c0_29 = arith.constant 0 : index
      %c0_30 = arith.constant 0 : index
      %c0_31 = arith.constant 0 : index
      %45 = vector.load %arg4[%c0_29, %c0_30, %c0_31] : memref<1x8x128xi32, #tpu.memory_space<vmem>>, vector<1x8x128xi32>
      %46 = vector.shape_cast %45 : vector<1x8x128xi32> to vector<8x128xi32>
      %47 = vector.shape_cast %44 : vector<8x128xi32> to vector<1x8x128xi32>
      tpu.vector_store %arg4[%c0_29, %c0_30, %c0_31], %47 {strides = array<i32>} : memref<1x8x128xi32, #tpu.memory_space<vmem>>, vector<1x8x128xi32>,
      %c0_32 = arith.constant 0 : index
      %c0_33 = arith.constant 0 : index
      %48 = vector.load %arg9[%c0_32, %c0_33] : memref<16x128xi32, #tpu.memory_space<vmem>>, vector<16x128xi32>
      %49 = vector.shape_cast %48 : vector<16x128xi32> to vector<2x8x128xi32>
      %cst_34 = arith.constant dense<0> : vector<8x128xi32>
      %50 = vector.multi_reduction <add>, %49, %cst_34 [0] : vector<2x8x128xi32> to vector<8x128xi32>
      %c0_35 = arith.constant 0 : index
      %c0_36 = arith.constant 0 : index
      %c0_37 = arith.constant 0 : index
      %51 = vector.load %arg5[%c0_35, %c0_36, %c0_37] : memref<1x8x128xi32, #tpu.memory_space<vmem>>, vector<1x8x128xi32>
      %52 = vector.shape_cast %51 : vector<1x8x128xi32> to vector<8x128xi32>
      %53 = vector.shape_cast %50 : vector<8x128xi32> to vector<1x8x128xi32>
      tpu.vector_store %arg5[%c0_35, %c0_36, %c0_37], %53 {strides = array<i32>} : memref<1x8x128xi32, #tpu.memory_space<vmem>>, vector<1x8x128xi32>,
      %c0_38 = arith.constant 0 : index
      %c0_39 = arith.constant 0 : index
      %54 = vector.load %arg10[%c0_38, %c0_39] : memref<16x128xf32, #tpu.memory_space<vmem>>, vector<16x128xf32>
      %55 = vector.shape_cast %54 : vector<16x128xf32> to vector<2x8x128xf32>
      %cst_40 = arith.constant dense<0.000000e+00> : vector<8x128xf32>
      %56 = vector.multi_reduction <add>, %55, %cst_40 [0] : vector<2x8x128xf32> to vector<8x128xf32>
      %c0_41 = arith.constant 0 : index
      %c0_42 = arith.constant 0 : index
      %c0_43 = arith.constant 0 : index
      %57 = vector.load %arg6[%c0_41, %c0_42, %c0_43] : memref<1x8x128xf32, #tpu.memory_space<vmem>>, vector<1x8x128xf32>
      %58 = vector.shape_cast %57 : vector<1x8x128xf32> to vector<8x128xf32>
      %59 = vector.shape_cast %56 : vector<8x128xf32> to vector<1x8x128xf32>
      tpu.vector_store %arg6[%c0_41, %c0_42, %c0_43], %59 {strides = array<i32>} : memref<1x8x128xf32, #tpu.memory_space<vmem>>, vector<1x8x128xf32>,
      %c0_44 = arith.constant 0 : index
      %c0_45 = arith.constant 0 : index
      %60 = vector.load %arg11[%c0_44, %c0_45] : memref<16x128xf32, #tpu.memory_space<vmem>>, vector<16x128xf32>
      %61 = vector.shape_cast %60 : vector<16x128xf32> to vector<2x8x128xf32>
      %cst_46 = arith.constant dense<0.000000e+00> : vector<8x128xf32>
      %62 = vector.multi_reduction <add>, %61, %cst_46 [0] : vector<2x8x128xf32> to vector<8x128xf32>
      %c0_47 = arith.constant 0 : index
      %c0_48 = arith.constant 0 : index
      %c0_49 = arith.constant 0 : index
      %63 = vector.load %arg7[%c0_47, %c0_48, %c0_49] : memref<1x8x128xf32, #tpu.memory_space<vmem>>, vector<1x8x128xf32>
      %64 = vector.shape_cast %63 : vector<1x8x128xf32> to vector<8x128xf32>
      %65 = vector.shape_cast %62 : vector<8x128xf32> to vector<1x8x128xf32>
      tpu.vector_store %arg7[%c0_47, %c0_48, %c0_49], %65 {strides = array<i32>} : memref<1x8x128xf32, #tpu.memory_space<vmem>>, vector<1x8x128xf32>,
    } else {
    }
    return
  }
  func.func @transform_0(%arg0: i32, %arg1: i32) -> (i32, i32) {
    %c1_i32 = arith.constant 1 : i32
    %0 = arith.muli %arg0, %c1_i32 : i32
    %1 = arith.addi %0, %arg1 : i32
    %c0_i32 = arith.constant 0 : i32
    %c0_i32_0 = arith.constant 0 : i32
    return %1, %c0_i32 : i32, i32
  }
  func.func @transform_1(%arg0: i32, %arg1: i32) -> (i32, i32) {
    %c1_i32 = arith.constant 1 : i32
    %0 = arith.muli %arg0, %c1_i32 : i32
    %1 = arith.addi %0, %arg1 : i32
    %c0_i32 = arith.constant 0 : i32
    %c0_i32_0 = arith.constant 0 : i32
    return %1, %c0_i32 : i32, i32
  }
  func.func @transform_2(%arg0: i32, %arg1: i32) -> (i32, i32, i32) {
    %c0_i32 = arith.constant 0 : i32
    %c0_i32_0 = arith.constant 0 : i32
    %c0_i32_1 = arith.constant 0 : i32
    return %arg0, %c0_i32, %c0_i32_0 : i32, i32, i32
  }
  func.func @transform_3(%arg0: i32, %arg1: i32) -> (i32, i32, i32) {
    %c0_i32 = arith.constant 0 : i32
    %c0_i32_0 = arith.constant 0 : i32
    %c0_i32_1 = arith.constant 0 : i32
    return %arg0, %c0_i32, %c0_i32_0 : i32, i32, i32
  }
  func.func @transform_4(%arg0: i32, %arg1: i32) -> (i32, i32, i32) {
    %c0_i32 = arith.constant 0 : i32
    %c0_i32_0 = arith.constant 0 : i32
    %c0_i32_1 = arith.constant 0 : i32
    return %arg0, %c0_i32, %c0_i32_0 : i32, i32, i32
  }
  func.func @transform_5(%arg0: i32, %arg1: i32) -> (i32, i32, i32) {
    %c0_i32 = arith.constant 0 : i32
    %c0_i32_0 = arith.constant 0 : i32
    %c0_i32_1 = arith.constant 0 : i32
    return %arg0, %c0_i32, %c0_i32_0 : i32, i32, i32
  }
}

</mosaic_0001>

<llo_original>
// kernel: tpu_custom_call.1
$region0: #{tpu_custom_call.1}
  #allocation0 [shape = 'u32[]', space=smem, size = 0x4, offset = 0x4, fixed_abs, tag = 'smem constant byte address 0x4 - core index']
  #allocation1 [shape = 'u32[144,128]{1,0:T(1,128)}', space=vmem, size = 0x12000, scoped, tag = 'internal scratch']
  #allocation2 [shape = 's32[16,128]{1,0:T(8,128)}', space=vmem, size = 0x2000, scoped, tag = 'scratch operand']
  #allocation3 [shape = 's32[16,128]{1,0:T(8,128)}', space=vmem, size = 0x2000, scoped, tag = 'scratch operand']
  #allocation4 [shape = 'f32[16,128]{1,0:T(8,128)}', space=vmem, size = 0x2000, scoped, tag = 'scratch operand']
  #allocation5 [shape = 'f32[16,128]{1,0:T(8,128)}', space=vmem, size = 0x2000, scoped, tag = 'scratch operand']
  %s0 = inlined_call_operand.hbm [shape: f32[16,128], index: 0, kind: input, shape index: {}]
  %s1 = inlined_call_operand.hbm [shape: s32[16,128], index: 1, kind: input, shape index: {}]
  %s2 = inlined_call_operand.hbm [shape: s32[1,8,128], index: 2, kind: output, shape index: {0}]
  %s3 = inlined_call_operand.hbm [shape: s32[1,8,128], index: 3, kind: output, shape index: {1}]
  %s4 = inlined_call_operand.hbm [shape: f32[1,8,128], index: 4, kind: output, shape index: {2}]
  %s5 = inlined_call_operand.hbm [shape: f32[1,8,128], index: 5, kind: output, shape index: {3}]
  %6 = xla_tuple %s2, %s3, %s4, %s5
  %s7 = sld [smem:[#allocation0]]
  $region58: #{tpu_custom_call.1} parent=0
    _
  %s9 = ssub.s32 1, %s7
  %s10 = scalar_select 0, %s9, %s7
  $region1: #{tpu_custom_call.1} parent=0
    #allocation6 [shape = 'u8[8192]{0}', space=vmem, size = 0x2000, scoped, tag = 'input window, operand 0, single buffered']
    #allocation7 [shape = 's32[1]{0}', space=sflag, size = 0x4, scoped, tag = 'scoped memory for tpu_custom_call.1']
    #allocation8 [shape = 's32[1]{0}', space=sflag, size = 0x4, scoped, tag = 'scoped memory for tpu_custom_call.1']
    #allocation9 [shape = 'u8[8192]{0}', space=vmem, size = 0x2000, scoped, tag = 'input window, operand 1, single buffered']
    #allocation10 [shape = 's32[1]{0}', space=sflag, size = 0x4, scoped, tag = 'scoped memory for tpu_custom_call.1']
    #allocation11 [shape = 'u8[4096]{0}', space=vmem, size = 0x1000, scoped, tag = 'output window, operand 0, single buffered']
    #allocation12 [shape = 'u8[4096]{0}', space=vmem, size = 0x1000, scoped, tag = 'output window, operand 1, single buffered']
    #allocation13 [shape = 's32[1]{0}', space=sflag, size = 0x4, scoped, tag = 'scoped memory for tpu_custom_call.1']
    #allocation14 [shape = 'u8[4096]{0}', space=vmem, size = 0x1000, scoped, tag = 'output window, operand 2, single buffered']
    #allocation15 [shape = 'u8[4096]{0}', space=vmem, size = 0x1000, scoped, tag = 'output window, operand 3, single buffered']
    #allocation16 [shape = 's32[1]{0}', space=sflag, size = 0x4, scoped, tag = 'scoped memory for tpu_custom_call.1']
    %11 = vsyncpa [#allocation7], 0
    %12 = vsyncpa [#allocation10], 0
    %13 = vsyncpa [#allocation8], 0
    %14 = vsyncpa [#allocation13], 0
    %15 = vsyncpa [#allocation16], 0
    // Predicated region
    $region2: #{tpu_custom_call.1} parent=1 // pred_check
      _
    $region3: #{tpu_custom_call.1} parent=1 // pred_check_branch
      %17 = sbr.rel (0) target = $region5
    $region4: #{tpu_custom_call.1} parent=1 // pred_region
      %s18 = sadd.s32 0, 0
      %s19 = smul.u32 2, %s18
      %s21 = ssub.s32 256, 256
      %22 = vsyncadd [#allocation7], %s21
      %s23 = smul.addr %s19, 128
      %s24 = scalar_lea.hbm %s0, %s23
      %s25 = sshll.u32 [#allocation6], 4
      %s26 = int_to_ptr.vmem [resolvable:$true] %s25
      %31 = dma.hbm_to_vmem [thread:$0]  %s24, 256, %s26, [#allocation7], 128, 128, 8
    $region5: #{tpu_custom_call.1} parent=1 // pred_fallthru
      _
    // Predicated region
    $region6: #{tpu_custom_call.1} parent=1 // pred_check
      _
    $region7: #{tpu_custom_call.1} parent=1 // pred_check_branch
      %33 = sbr.rel (0) target = $region9
    $region8: #{tpu_custom_call.1} parent=1 // pred_region
      %s34 = sadd.s32 0, 0
      %s35 = smul.u32 2, %s34
      %s37 = ssub.s32 256, 256
      %38 = vsyncadd [#allocation10], %s37
      %s39 = smul.addr %s35, 128
      %s40 = scalar_lea.hbm %s1, %s39
      %s41 = sshll.u32 [#allocation9], 4
      %s42 = int_to_ptr.vmem [resolvable:$true] %s41
      %47 = dma.hbm_to_vmem [thread:$0]  %s40, 256, %s42, [#allocation10], 128, 128, 8
    $region9: #{tpu_custom_call.1} parent=1 // pred_fallthru
      _
    // Predicated region
    $region10: #{tpu_custom_call.1} parent=1 // pred_check
      _
    $region11: #{tpu_custom_call.1} parent=1 // pred_check_branch
      %49 = sbr.rel (0) target = $region13
    $region12: #{tpu_custom_call.1} parent=1 // pred_region
      %50 = dma.done [#allocation7], 256
    $region13: #{tpu_custom_call.1} parent=1 // pred_fallthru
      _
    // Predicated region
    $region14: #{tpu_custom_call.1} parent=1 // pred_check
      _
    $region15: #{tpu_custom_call.1} parent=1 // pred_check_branch
      %52 = sbr.rel (0) target = $region17
    $region16: #{tpu_custom_call.1} parent=1 // pred_region
      %53 = dma.done [#allocation10], 256
    $region17: #{tpu_custom_call.1} parent=1 // pred_fallthru
      _
    %s54 = sadd.s32 0, 0
    %s55 = smul.u32 2, %s54
    %s56 = sadd.s32 0, 0
    %s57 = smul.u32 2, %s56
    %p58 = scmp.eq.s32.totalorder 0, 0
    // Predicated region
    $region18: #{tpu_custom_call.1} parent=1 // pred_check
      %p59 = pneg %p58
    $region19: #{tpu_custom_call.1} parent=1 // pred_check_branch
      %61 = sbr.rel (%p59) target = $region21
    $region20: #{tpu_custom_call.1} parent=1 // pred_region
      %62 = vst [vmem:[#allocation2] sm:$0xff] 0
      %63 = vst [vmem:[#allocation2 + $0x8] sm:$0xff] 0
      %64 = vst [vmem:[#allocation3] sm:$0xff] 0
      %65 = vst [vmem:[#allocation3 + $0x8] sm:$0xff] 0
      %66 = vst [vmem:[#allocation4] sm:$0xff] 0.0
      %67 = vst [vmem:[#allocation4 + $0x8] sm:$0xff] 0.0
      %68 = vst [vmem:[#allocation5] sm:$0xff] 0.0
      %69 = vst [vmem:[#allocation5 + $0x8] sm:$0xff] 0.0
    $region21: #{tpu_custom_call.1} parent=1 // pred_fallthru
      _
    %v70 = vld [vmem:[#allocation6] sm:$0xff]
    %v71 = vld [vmem:[#allocation6 + $0x8] sm:$0xff]
    %v72 = vld [vmem:[#allocation9] sm:$0xff]
    %v73 = vld [vmem:[#allocation9 + $0x8] sm:$0xff]
    %vm74 = vcmp.eq.s32.totalorder %v72, 1
    %vm75 = vcmp.eq.s32.totalorder %v73, 1
    %vm76 = vcmp.eq.s32.totalorder %v72, 0
    %vm77 = vcmp.eq.s32.totalorder %v73, 0
    %v78 = vsel %vm74, 1, 0
    %v79 = vsel %vm75, 1, 0
    %v80 = vcvt.s32.f32 %v78
    %v81 = vcvt.s32.f32 %v79
    %v82 = vmax.f32 %v70, 0.0
    %v83 = vmax.f32 %v71, 0.0
    %v84 = vmul.f32 %v70, %v80
    %v85 = vmul.f32 %v71, %v81
    %v86 = vsub.f32 %v82, %v84
    %v87 = vsub.f32 %v83, %v85
    %v88 = vand.u32 2147483647, %v70
    %v89 = vand.u32 2147483647, %v71
    %v90 = vsub.f32 0.0, %v88
    %v91 = vsub.f32 0.0, %v89
    %v92 = vmul.f32 %v90, 1.442695
    %v93 = vpow.pop %v92
    %v94 = vmul.f32 %v91, 1.442695
    %v95 = vpow.pop %v94
    %v96 = vadd.f32 %v93, 1.0
    %v97 = vlog2.pop %v96
    %v98 = vmul.f32 %v97, 0.6931472
    %v99 = vmul.f32 -0.5, %v93
    %v100 = vadd.f32 %v99, 1.0
    %v101 = vmul.f32 %v100, %v93
    %v102 = vand.u32 2147483647, %v93
    %vm103 = vcmp.lt.f32.partialorder %v102, 0.0004427343
    %v104 = vsel %vm103, %v101, %v98
    %v105 = vadd.f32 %v95, 1.0
    %v106 = vlog2.pop %v105
    %v107 = vmul.f32 %v106, 0.6931472
    %v108 = vmul.f32 -0.5, %v95
    %v109 = vadd.f32 %v108, 1.0
    %v110 = vmul.f32 %v109, %v95
    %v111 = vand.u32 2147483647, %v95
    %vm112 = vcmp.lt.f32.partialorder %v111, 0.0004427343
    %v113 = vsel %vm112, %v110, %v107
    %v114 = vadd.f32 %v86, %v104
    %v115 = vadd.f32 %v87, %v113
    %v116 = vld [vmem:[#allocation2] sm:$0xff]
    %v117 = vld [vmem:[#allocation2 + $0x8] sm:$0xff]
    %v118 = vadd.s32 %v116, %v78
    %v119 = vadd.s32 %v117, %v79
    %120 = vst [vmem:[#allocation2] sm:$0xff] %v118
    %121 = vst [vmem:[#allocation2 + $0x8] sm:$0xff] %v119
    %v122 = vld [vmem:[#allocation3] sm:$0xff]
    %v123 = vld [vmem:[#allocation3 + $0x8] sm:$0xff]
    %v124 = vsel %vm76, 1, 0
    %v125 = vsel %vm77, 1, 0
    %v126 = vadd.s32 %v122, %v124
    %v127 = vadd.s32 %v123, %v125
    %128 = vst [vmem:[#allocation3] sm:$0xff] %v126
    %129 = vst [vmem:[#allocation3 + $0x8] sm:$0xff] %v127
    %v130 = vld [vmem:[#allocation4] sm:$0xff]
    %v131 = vld [vmem:[#allocation4 + $0x8] sm:$0xff]
    %v132 = vsel %vm74, %v114, 0.0
    %v133 = vsel %vm75, %v115, 0.0
    %v134 = vadd.f32 %v130, %v132
    %v135 = vadd.f32 %v131, %v133
    %136 = vst [vmem:[#allocation4] sm:$0xff] %v134
    %137 = vst [vmem:[#allocation4 + $0x8] sm:$0xff] %v135
    %v138 = vld [vmem:[#allocation5] sm:$0xff]
    %v139 = vld [vmem:[#allocation5 + $0x8] sm:$0xff]
    %v140 = vsel %vm76, %v114, 0.0
    %v141 = vsel %vm77, %v115, 0.0
    %v142 = vadd.f32 %v138, %v140
    %v143 = vadd.f32 %v139, %v141
    %144 = vst [vmem:[#allocation5] sm:$0xff] %v142
    %145 = vst [vmem:[#allocation5 + $0x8] sm:$0xff] %v143
    // Predicated region
    $region22: #{tpu_custom_call.1} parent=1 // pred_check
      %p146 = pneg %p58
    $region23: #{tpu_custom_call.1} parent=1 // pred_check_branch
      %148 = sbr.rel (%p146) target = $region25
    $region24: #{tpu_custom_call.1} parent=1 // pred_region
      %v149 = vld [vmem:[#allocation2] sm:$0xff]
      %v150 = vld [vmem:[#allocation2 + $0x8] sm:$0xff]
      %v151 = vadd.s32 %v149, %v150
      %152 = vst [vmem:[#allocation11] sm:$0xff] %v151
      %v153 = vld [vmem:[#allocation3] sm:$0xff]
      %v154 = vld [vmem:[#allocation3 + $0x8] sm:$0xff]
      %v155 = vadd.s32 %v153, %v154
      %156 = vst [vmem:[#allocation12] sm:$0xff] %v155
      %v157 = vld [vmem:[#allocation4] sm:$0xff]
      %v158 = vld [vmem:[#allocation4 + $0x8] sm:$0xff]
      %v159 = vadd.f32 %v157, %v158
      %160 = vst [vmem:[#allocation14] sm:$0xff] %v159
      %v161 = vld [vmem:[#allocation5] sm:$0xff]
      %v162 = vld [vmem:[#allocation5 + $0x8] sm:$0xff]
      %v163 = vadd.f32 %v161, %v162
      %164 = vst [vmem:[#allocation15] sm:$0xff] %v163
    $region25: #{tpu_custom_call.1} parent=1 // pred_fallthru
      _
    // Predicated region
    $region26: #{tpu_custom_call.1} parent=1 // pred_check
      _
    $region27: #{tpu_custom_call.1} parent=1 // pred_check_branch
      %166 = sbr.rel (0) target = $region29
    $region28: #{tpu_custom_call.1} parent=1 // pred_region
      %s168 = ssub.s32 128, 128
      %169 = vsyncadd [#allocation8], %s168
      %s171 = sshll.u32 [#allocation11], 4
      %s172 = int_to_ptr.vmem [resolvable:$true] %s171
      %174 = dma.vmem_to_hbm [thread:$0]  %s172, 128, %s2, [#allocation8]
    $region29: #{tpu_custom_call.1} parent=1 // pred_fallthru
      _
    // Predicated region
    $region30: #{tpu_custom_call.1} parent=1 // pred_check
      _
    $region31: #{tpu_custom_call.1} parent=1 // pred_check_branch
      %176 = sbr.rel (0) target = $region33
    $region32: #{tpu_custom_call.1} parent=1 // pred_region
      %s178 = ssub.s32 128, 128
      %179 = vsyncadd [#allocation13], %s178
      %s181 = sshll.u32 [#allocation12], 4
      %s182 = int_to_ptr.vmem [resolvable:$true] %s181
      %184 = dma.vmem_to_hbm [thread:$0]  %s182, 128, %s3, [#allocation13]
    $region33: #{tpu_custom_call.1} parent=1 // pred_fallthru
      _
    // Predicated region
    $region34: #{tpu_custom_call.1} parent=1 // pred_check
      _
    $region35: #{tpu_custom_call.1} parent=1 // pred_check_branch
      %186 = sbr.rel (0) target = $region37
    $region36: #{tpu_custom_call.1} parent=1 // pred_region
      %s188 = ssub.s32 128, 128
      %189 = vsyncadd [#allocation13], %s188
      %s191 = sshll.u32 [#allocation14], 4
      %s192 = int_to_ptr.vmem [resolvable:$true] %s191
      %194 = dma.vmem_to_hbm [thread:$0]  %s192, 128, %s4, [#allocation13]
    $region37: #{tpu_custom_call.1} parent=1 // pred_fallthru
      _
    // Predicated region
    $region38: #{tpu_custom_call.1} parent=1 // pred_check
      _
    $region39: #{tpu_custom_call.1} parent=1 // pred_check_branch
      %196 = sbr.rel (0) target = $region41
    $region40: #{tpu_custom_call.1} parent=1 // pred_region
      %s198 = ssub.s32 128, 128
      %199 = vsyncadd [#allocation16], %s198
      %s201 = sshll.u32 [#allocation15], 4
      %s202 = int_to_ptr.vmem [resolvable:$true] %s201
      %204 = dma.vmem_to_hbm [thread:$0]  %s202, 128, %s5, [#allocation16]
    $region41: #{tpu_custom_call.1} parent=1 // pred_fallthru
      _
    // Predicated region
    $region42: #{tpu_custom_call.1} parent=1 // pred_check
      _
    $region43: #{tpu_custom_call.1} parent=1 // pred_check_branch
      %206 = sbr.rel (0) target = $region45
    $region44: #{tpu_custom_call.1} parent=1 // pred_region
      %207 = dma.done [#allocation8], 128
    $region45: #{tpu_custom_call.1} parent=1 // pred_fallthru
      _
    // Predicated region
    $region46: #{tpu_custom_call.1} parent=1 // pred_check
      _
    $region47: #{tpu_custom_call.1} parent=1 // pred_check_branch
      %209 = sbr.rel (0) target = $region49
    $region48: #{tpu_custom_call.1} parent=1 // pred_region
      %210 = dma.done [#allocation13], 128
    $region49: #{tpu_custom_call.1} parent=1 // pred_fallthru
      _
    // Predicated region
    $region50: #{tpu_custom_call.1} parent=1 // pred_check
      _
    $region51: #{tpu_custom_call.1} parent=1 // pred_check_branch
      %212 = sbr.rel (0) target = $region53
    $region52: #{tpu_custom_call.1} parent=1 // pred_region
      %213 = dma.done [#allocation13], 128
    $region53: #{tpu_custom_call.1} parent=1 // pred_fallthru
      _
    // Predicated region
    $region54: #{tpu_custom_call.1} parent=1 // pred_check
      _
    $region55: #{tpu_custom_call.1} parent=1 // pred_check_branch
      %215 = sbr.rel (0) target = $region57
    $region56: #{tpu_custom_call.1} parent=1 // pred_region
      %216 = dma.done [#allocation16], 128
    $region57: #{tpu_custom_call.1} parent=1 // pred_fallthru
      _
    %217 = vsyncpa [#allocation7], 1
    %218 = vsyncpa [#allocation10], 1
    %219 = vsyncpa [#allocation8], 1
    %220 = vsyncpa [#allocation13], 1
    %221 = vsyncpa [#allocation16], 1

</llo_original>
